<compile_context>
chip_gen: v6e
topology: v6e:2x2x1
jax: 0.10.0
libtpu: 0.0.40
codegen_flags: <defaults>
</compile_context>

<pallas_src>
import jax
import jax.numpy as jnp
from jax.experimental import pallas as pl
from jax.experimental.pallas import tpu as pltpu


def _residual_kernel(x_ref, w1_ref, w2_ref, o_ref):
    """One grid step = B_TILE whole sequences in the module's native (C, L) layout.

    x_ref  : (B_TILE, C, L) f32  input activations (NCL block)
    w1_ref : (3, C, C)      f32  conv1 taps, w1_ref[k] = W1[:, :, k]   (C_out, C_in)
    w2_ref : (C, C)         f32  conv2 (1x1) weights = W2[:, :, 0]
    o_ref  : (B_TILE, C, L) f32  residual output (same NCL block)
    """
    b_tile, _c, l = x_ref.shape

    # Shift matrices along L:  x @ s_prev -> x[:, l-1] (zero at l=0),
    #                          x @ s_next -> x[:, l+1] (zero at l=L-1).
    # This implements both the neighbour gather and the conv zero-padding as plain MXU
    # matmuls (no exotic lane ops).  Built once per grid step; cheap VPU work that hides
    # under the DMA of a memory-bound kernel.
    # TODO(synk): for very long sequences with tiny C (L >> 4*C) the shift matmuls start to
    # dominate FLOPs; switch to an XLU lane-roll + iota mask in that regime.
    row = jax.lax.broadcasted_iota(jnp.int32, (l, l), 0)
    col = jax.lax.broadcasted_iota(jnp.int32, (l, l), 1)
    s_prev = jnp.where(row + 1 == col, 1.0, 0.0).astype(jnp.float32)   # superdiagonal
    s_next = jnp.where(row == col + 1, 1.0, 0.0).astype(jnp.float32)   # subdiagonal

    w1_0 = w1_ref[0]
    w1_1 = w1_ref[1]
    w1_2 = w1_ref[2]
    w2 = w2_ref[...]

    for b in range(b_tile):                       # static unroll; b_tile kept small
        x = x_ref[b]                              # (C, L) f32
        x_prev = jnp.dot(x, s_prev, preferred_element_type=jnp.float32)
        x_next = jnp.dot(x, s_next, preferred_element_type=jnp.float32)
        # Three accumulating K=C dots (no concatenated 3C operand).
        h = (jnp.dot(w1_0, x_prev, preferred_element_type=jnp.float32)
             + jnp.dot(w1_1, x, preferred_element_type=jnp.float32)
             + jnp.dot(w1_2, x_next, preferred_element_type=jnp.float32))
        h = jnp.maximum(h, 0.0)
        y = jnp.dot(w2, h, preferred_element_type=jnp.float32)
        o_ref[b] = x + y


_MAX_UNROLL = 8                 # cap on sequences per grid step (static in-kernel unroll)
_TARGET_STEP_BYTES = 4 << 20    # ~4 MiB of f32 in+out per step: DMA time >> 0.35 us overhead


def _choose_batch_tile(n, c, l):
    """Sequences per grid step: as large as useful, but keep >= 2 grid steps when N >= 2."""
    per_seq_bytes = 2 * c * l * 4            # f32 in + out for one sequence
    best = 1
    for k in range(1, min(n, _MAX_UNROLL) + 1):
        if n % k:
            continue
        if n >= 2 and n // k < 2:
            continue                          # both v7x TensorCores must get work
        if k > 1 and k * per_seq_bytes > _TARGET_STEP_BYTES:
            continue
        best = k
    return best


def residual_layer(x_ncl, w1, w2):
    """Forward of ResidualLayer for PyTorch-layout input x_ncl: (N, C, L), float32.

    w1: (C, C, 3) Conv1d(k=3, pad=1, bias=False) weight; w2: (C, C, 1) Conv1d(k=1) weight.
    Runs entirely in the native NCL layout: no transpose / pad / slice HBM passes.
    """
    n, c, l = x_ncl.shape
    assert w1.shape == (c, c, 3), w1.shape
    assert w2.shape == (c, c, 1), w2.shape

    b_tile = _choose_batch_tile(n, c, l)
    grid = (n // b_tile,)
    # TODO(synk): a single sequence whose (C, L) f32 block exceeds VMEM would need
    # intra-sequence L tiling with halo columns; not required at these model sizes.

    w1s = jnp.moveaxis(w1, 2, 0).astype(jnp.float32)     # (3, C, C): w1s[k] = W1[:, :, k]
    w2m = w2[:, :, 0].astype(jnp.float32)                # (C, C)

    # Explicit VMEM accounting: double-buffered in/out activation blocks + (constant-index,
    # but still 2x-buffered by default) weight blocks, with slack for in-kernel temporaries.
    act_bytes = b_tile * c * l * 4
    w_bytes = (3 * c * c + c * c) * 4
    footprint = 2 * (2 * act_bytes + w_bytes)
    vmem_limit = int(min(max(4 * footprint + (4 << 20), 16 << 20), 48 << 20))

    return pl.pallas_call(
        _residual_kernel,
        out_shape=jax.ShapeDtypeStruct((n, c, l), jnp.float32),
        grid=grid,
        in_specs=[
            pl.BlockSpec((b_tile, c, l), lambda i: (i, 0, 0)),   # activations: tiled over N
            pl.BlockSpec((3, c, c), lambda i: (0, 0, 0)),        # conv1 taps: resident
            pl.BlockSpec((c, c), lambda i: (0, 0)),              # conv2 1x1 : resident
        ],
        out_specs=pl.BlockSpec((b_tile, c, l), lambda i: (i, 0, 0)),
        compiler_params=pltpu.CompilerParams(
            dimension_semantics=("parallel",),   # shard batch tiles across TCs (v7x megacore)
            vmem_limit_bytes=vmem_limit,
        ),
    )(x_ncl, w1s, w2m)


def _reference(x_ncl, w1, w2):
    """Pure f32 reference of the PyTorch forward (NCL conv1d, pad=1, bias=False)."""
    _, _, l = x_ncl.shape
    xp = jnp.pad(x_ncl, ((0, 0), (0, 0), (1, 1)))
    hp = jax.lax.Precision.HIGHEST
    h = sum(jnp.einsum("oc,ncl->nol", w1[:, :, k], xp[:, :, k:k + l], precision=hp)
            for k in range(3))
    h = jnp.maximum(h, 0.0)
    y = jnp.einsum("oc,ncl->nol", w2[:, :, 0], h, precision=hp)
    return x_ncl + y


if __name__ == "__main__":
    key = jax.random.PRNGKey(0)
    k_x, k_w1, k_w2 = jax.random.split(key, 3)

    N, C, L = 2, 32, 16          # batch, channels (in == out for the residual), seq length
    x = jax.random.normal(k_x, (N, C, L), dtype=jnp.float32)
    w1 = 0.1 * jax.random.normal(k_w1, (C, C, 3), dtype=jnp.float32)   # Conv1d(k=3) weight
    w2 = 0.1 * jax.random.normal(k_w2, (C, C, 1), dtype=jnp.float32)   # Conv1d(k=1) weight

    out = jax.block_until_ready(residual_layer(x, w1, w2))
    assert out.shape == (N, C, L)

    ref = _reference(x, w1, w2)
    max_err = jnp.max(jnp.abs(out - ref))
    assert jnp.allclose(out, ref, atol=5e-2, rtol=5e-2), f"max |diff| = {max_err}"

    print("KERNEL_OK")
</pallas_src>

<mosaic_0001>
module attributes {stable_mosaic.version = 11 : i64} {
  func.func @_residual_kernel(%arg0: i32, %arg1: memref<1x32x16xf32, #tpu.memory_space<vmem>>, %arg2: memref<3x32x32xf32, #tpu.memory_space<vmem>>, %arg3: memref<32x32xf32, #tpu.memory_space<vmem>>, %arg4: memref<1x32x16xf32, #tpu.memory_space<vmem>>) attributes {dimension_semantics = [#tpu.dimension_semantics<parallel>], iteration_bounds = array<i64: 2>, scalar_prefetch = 0 : i64, scratch_operands = 0 : i64, tpu.core_type = #tpu.core_type<tc>, window_params = [{transform_indices = @transform_0, window_bounds = array<i64: 1, 32, 16>}, {pipeline_mode = #tpu.pipeline_mode<synchronous>, transform_indices = @transform_1, window_bounds = array<i64: 3, 32, 32>}, {pipeline_mode = #tpu.pipeline_mode<synchronous>, transform_indices = @transform_2, window_bounds = array<i64: 32, 32>}, {transform_indices = @transform_3, window_bounds = array<i64: 1, 32, 16>}]} {
    %0 = tpu.iota {dimensions = array<i32: 0>} : vector<16x16xi32>
    %1 = tpu.iota {dimensions = array<i32: 1>} : vector<16x16xi32>
    %c1_i32 = arith.constant 1 : i32
    %2 = vector.broadcast %c1_i32 : i32 to vector<16x16xi32>
    %3 = arith.addi %0, %2 : vector<16x16xi32>
    %4 = arith.cmpi eq, %3, %1 : vector<16x16xi32>
    %cst = arith.constant 1.000000e+00 : f32
    %cst_0 = arith.constant 0.000000e+00 : f32
    %5 = vector.broadcast %cst : f32 to vector<16x16xf32>
    %6 = vector.broadcast %cst_0 : f32 to vector<16x16xf32>
    %7 = arith.select %4, %5, %6 : vector<16x16xi1>, vector<16x16xf32>
    %c1_i32_1 = arith.constant 1 : i32
    %8 = vector.broadcast %c1_i32_1 : i32 to vector<16x16xi32>
    %9 = arith.addi %1, %8 : vector<16x16xi32>
    %10 = arith.cmpi eq, %0, %9 : vector<16x16xi32>
    %cst_2 = arith.constant 1.000000e+00 : f32
    %cst_3 = arith.constant 0.000000e+00 : f32
    %11 = vector.broadcast %cst_2 : f32 to vector<16x16xf32>
    %12 = vector.broadcast %cst_3 : f32 to vector<16x16xf32>
    %13 = arith.select %10, %11, %12 : vector<16x16xi1>, vector<16x16xf32>
    %c0 = arith.constant 0 : index
    %c0_4 = arith.constant 0 : index
    %c0_5 = arith.constant 0 : index
    %14 = vector.load %arg2[%c0, %c0_4, %c0_5] : memref<3x32x32xf32, #tpu.memory_space<vmem>>, vector<1x32x32xf32>
    %15 = vector.shape_cast %14 : vector<1x32x32xf32> to vector<32x32xf32>
    %c1 = arith.constant 1 : index
    %c0_6 = arith.constant 0 : index
    %c0_7 = arith.constant 0 : index
    %16 = vector.load %arg2[%c1, %c0_6, %c0_7] : memref<3x32x32xf32, #tpu.memory_space<vmem>>, vector<1x32x32xf32>
    %17 = vector.shape_cast %16 : vector<1x32x32xf32> to vector<32x32xf32>
    %c2 = arith.constant 2 : index
    %c0_8 = arith.constant 0 : index
    %c0_9 = arith.constant 0 : index
    %18 = vector.load %arg2[%c2, %c0_8, %c0_9] : memref<3x32x32xf32, #tpu.memory_space<vmem>>, vector<1x32x32xf32>
    %19 = vector.shape_cast %18 : vector<1x32x32xf32> to vector<32x32xf32>
    %c0_10 = arith.constant 0 : index
    %c0_11 = arith.constant 0 : index
    %20 = vector.load %arg3[%c0_10, %c0_11] : memref<32x32xf32, #tpu.memory_space<vmem>>, vector<32x32xf32>
    %c0_12 = arith.constant 0 : index
    %c0_13 = arith.constant 0 : index
    %c0_14 = arith.constant 0 : index
    %21 = vector.load %arg1[%c0_12, %c0_13, %c0_14] : memref<1x32x16xf32, #tpu.memory_space<vmem>>, vector<1x32x16xf32>
    %22 = vector.shape_cast %21 : vector<1x32x16xf32> to vector<32x16xf32>
    %cst_15 = arith.constant dense<0.000000e+00> : vector<32x16xf32>
    %23 = tpu.matmul %22, %7, %cst_15 {dimension_numbers = #tpu.dot_dimension_numbers<[1], [0], [0], [1], [0, 0, 1, 1], [], []>} : vector<32x16xf32>, vector<16x16xf32>, vector<32x16xf32> -> vector<32x16xf32>
    %cst_16 = arith.constant dense<0.000000e+00> : vector<32x16xf32>
    %24 = tpu.matmul %22, %13, %cst_16 {dimension_numbers = #tpu.dot_dimension_numbers<[1], [0], [0], [1], [0, 0, 1, 1], [], []>} : vector<32x16xf32>, vector<16x16xf32>, vector<32x16xf32> -> vector<32x16xf32>
    %cst_17 = arith.constant dense<0.000000e+00> : vector<32x16xf32>
    %25 = tpu.matmul %15, %23, %cst_17 {dimension_numbers = #tpu.dot_dimension_numbers<[1], [0], [0], [1], [0, 0, 1, 1], [], []>} : vector<32x32xf32>, vector<32x16xf32>, vector<32x16xf32> -> vector<32x16xf32>
    %cst_18 = arith.constant dense<0.000000e+00> : vector<32x16xf32>
    %26 = tpu.matmul %17, %22, %cst_18 {dimension_numbers = #tpu.dot_dimension_numbers<[1], [0], [0], [1], [0, 0, 1, 1], [], []>} : vector<32x32xf32>, vector<32x16xf32>, vector<32x16xf32> -> vector<32x16xf32>
    %27 = arith.addf %25, %26 : vector<32x16xf32>
    %cst_19 = arith.constant dense<0.000000e+00> : vector<32x16xf32>
    %28 = tpu.matmul %19, %24, %cst_19 {dimension_numbers = #tpu.dot_dimension_numbers<[1], [0], [0], [1], [0, 0, 1, 1], [], []>} : vector<32x32xf32>, vector<32x16xf32>, vector<32x16xf32> -> vector<32x16xf32>
    %29 = arith.addf %27, %28 : vector<32x16xf32>
    %cst_20 = arith.constant 0.000000e+00 : f32
    %30 = vector.broadcast %cst_20 : f32 to vector<32x16xf32>
    %31 = arith.maximumf %29, %30 : vector<32x16xf32>
    %cst_21 = arith.constant dense<0.000000e+00> : vector<32x16xf32>
    %32 = tpu.matmul %20, %31, %cst_21 {dimension_numbers = #tpu.dot_dimension_numbers<[1], [0], [0], [1], [0, 0, 1, 1], [], []>} : vector<32x32xf32>, vector<32x16xf32>, vector<32x16xf32> -> vector<32x16xf32>
    %33 = arith.addf %22, %32 : vector<32x16xf32>
    %c0_22 = arith.constant 0 : index
    %c0_23 = arith.constant 0 : index
    %c0_24 = arith.constant 0 : index
    %34 = vector.load %arg4[%c0_22, %c0_23, %c0_24] : memref<1x32x16xf32, #tpu.memory_space<vmem>>, vector<1x32x16xf32>
    %35 = vector.shape_cast %34 : vector<1x32x16xf32> to vector<32x16xf32>
    %36 = vector.shape_cast %33 : vector<32x16xf32> to vector<1x32x16xf32>
    tpu.vector_store %arg4[%c0_22, %c0_23, %c0_24], %36 {strides = array<i32>} : memref<1x32x16xf32, #tpu.memory_space<vmem>>, vector<1x32x16xf32>,
    return
  }
  func.func @transform_0(%arg0: i32) -> (i32, i32, i32) {
    %c0_i32 = arith.constant 0 : i32
    %c0_i32_0 = arith.constant 0 : i32
    %c0_i32_1 = arith.constant 0 : i32
    return %arg0, %c0_i32, %c0_i32_0 : i32, i32, i32
  }
  func.func @transform_1(%arg0: i32) -> (i32, i32, i32) {
    %c0_i32 = arith.constant 0 : i32
    %c0_i32_0 = arith.constant 0 : i32
    %c0_i32_1 = arith.constant 0 : i32
    %c0_i32_2 = arith.constant 0 : i32
    return %c0_i32, %c0_i32_0, %c0_i32_1 : i32, i32, i32
  }
  func.func @transform_2(%arg0: i32) -> (i32, i32) {
    %c0_i32 = arith.constant 0 : i32
    %c0_i32_0 = arith.constant 0 : i32
    %c0_i32_1 = arith.constant 0 : i32
    return %c0_i32, %c0_i32_0 : i32, i32
  }
  func.func @transform_3(%arg0: i32) -> (i32, i32, i32) {
    %c0_i32 = arith.constant 0 : i32
    %c0_i32_0 = arith.constant 0 : i32
    %c0_i32_1 = arith.constant 0 : i32
    return %arg0, %c0_i32, %c0_i32_0 : i32, i32, i32
  }
}

</mosaic_0001>

<llo_original>
// kernel: tpu_custom_call.1
$region0: #{tpu_custom_call.1}
  #allocation0 [shape = 'u32[]', space=smem, size = 0x4, offset = 0x4, fixed_abs, tag = 'smem constant byte address 0x4 - core index']
  #allocation1 [shape = 'u32[144,128]{1,0:T(1,128)}', space=vmem, size = 0x12000, scoped, tag = 'internal scratch']
  %s0 = inlined_call_operand.vmem [shape: f32[2,32,16], index: 0, kind: input, shape index: {}]
  %s1 = inlined_call_operand.vmem [shape: f32[3,32,32], index: 1, kind: input, shape index: {}]
  %s2 = inlined_call_operand.hbm [shape: f32[32,32], index: 2, kind: input, shape index: {}]
  %s3 = inlined_call_operand.vmem [shape: f32[2,32,16], index: 3, kind: output, shape index: {}]
  %s4 = sld [smem:[#allocation0]]
  $region49: #{tpu_custom_call.1} parent=0
    _
  %s6 = ssub.s32 1, %s4
  %s7 = scalar_select 0, %s6, %s4
  $region1: #{tpu_custom_call.1} parent=0
    #allocation2 [shape = 'u8[16384]{0}', space=vmem, size = 0x4000, scoped, tag = 'input window, operand 2, single buffered']
    #allocation3 [shape = 's32[2]{0}', space=sflag, size = 0x8, scoped, tag = 'scoped memory for tpu_custom_call.1']
    %8 = vsyncpa [#allocation3], 0
    loop: start=0, step=1, limit=4
    $region2: #{tpu_custom_call.1} parent=1 // loop_pre_header
      _
    $region3: #{tpu_custom_call.1} parent=1 // loop_header
      %s10 = sphi 0, %s14
      %p11 = scmp.ge.s32.totalorder %s10, 4
      %s20 = sphi 0, %s22
      %s23 = sphi 0, %s20
      %s24 = sphi 0, %s23
      %s40 = sphi 0, %s24
      %s44 = sphi 0, %s44
      %s46 = sphi 0, %s44
      %s47 = sphi 0, %s46
      %s61 = sphi 0, %s47
      %s65 = sphi 0, %s65
      %s67 = sphi 0, %s65
      %s68 = sphi 0, %s67
      %s82 = sphi 0, %s68
      %s88 = sphi 0, %s90
      %s91 = sphi 0, %s88
      %s92 = sphi 0, %s91
      %s108 = sphi 0, %s92
    $region4: #{tpu_custom_call.1} parent=1 // loop_header_branch
      %13 = sbr.rel (%p11) target = $region8
    $region5: #{tpu_custom_call.1} parent=1 // loop_body
      %s15 = ssub.s32 %s10, 1
      %s16 = ssub.s32 %s10, 2
      %s17 = sadd.s32 %s10, 1
      %s18 = ssub.s32 %s10, %s17
      %p19 = scmp.eq.s32.totalorder %s18, 0
      %s21 = sadd.s32 %s20, 1
      %s22 = scalar_select %p19, %s20, %s21
      %p25 = pneg %p19
      %p26 = scmp.eq.s32.totalorder %s10, 1
      %p27 = por %p25, %p26
      %p28 = scmp.ne.s32.totalorder %s20, %s23
      %p29 = scmp.eq.s32.totalorder %s10, 0
      %p30 = por %p28, %p29
      %p31 = scmp.ne.s32.totalorder %s20, %s23
      %p32 = scmp.eq.s32.totalorder %s15, 1
      %p33 = por %p31, %p32
      %p34 = scmp.ne.s32.totalorder %s23, %s24
      %p35 = scmp.eq.s32.totalorder %s15, 0
      %p36 = por %p34, %p35
      %p37 = scmp.ne.s32.totalorder %s23, %s24
      %p38 = scmp.eq.s32.totalorder %s16, 1
      %p39 = por %p37, %p38
      %p41 = scmp.ne.s32.totalorder %s24, %s40
      %p42 = scmp.eq.s32.totalorder %s16, 0
      %p43 = por %p41, %p42
      %s45 = sadd.s32 %s44, 1
      %p48 = scmp.eq.s32.totalorder %s10, 1
      %p49 = scmp.ne.s32.totalorder %s44, %s46
      %p50 = scmp.eq.s32.totalorder %s10, 0
      %p51 = por %p49, %p50
      %p52 = scmp.ne.s32.totalorder %s44, %s46
      %p53 = scmp.eq.s32.totalorder %s15, 1
      %p54 = por %p52, %p53
      %p55 = scmp.ne.s32.totalorder %s46, %s47
      %p56 = scmp.eq.s32.totalorder %s15, 0
      %p57 = por %p55, %p56
      %p58 = scmp.ne.s32.totalorder %s46, %s47
      %p59 = scmp.eq.s32.totalorder %s16, 1
      %p60 = por %p58, %p59
      %p62 = scmp.ne.s32.totalorder %s47, %s61
      %p63 = scmp.eq.s32.totalorder %s16, 0
      %p64 = por %p62, %p63
      %s66 = sadd.s32 %s65, 1
      %p69 = scmp.eq.s32.totalorder %s10, 1
      %p70 = scmp.ne.s32.totalorder %s65, %s67
      %p71 = scmp.eq.s32.totalorder %s10, 0
      %p72 = por %p70, %p71
      %p73 = scmp.ne.s32.totalorder %s65, %s67
      %p74 = scmp.eq.s32.totalorder %s15, 1
      %p75 = por %p73, %p74
      %p76 = scmp.ne.s32.totalorder %s67, %s68
      %p77 = scmp.eq.s32.totalorder %s15, 0
      %p78 = por %p76, %p77
      %p79 = scmp.ne.s32.totalorder %s67, %s68
      %p80 = scmp.eq.s32.totalorder %s16, 1
      %p81 = por %p79, %p80
      %p83 = scmp.ne.s32.totalorder %s68, %s82
      %p84 = scmp.eq.s32.totalorder %s16, 0
      %p85 = por %p83, %p84
      %s86 = ssub.s32 %s10, %s17
      %p87 = scmp.eq.s32.totalorder %s86, 0
      %s89 = sadd.s32 %s88, 1
      %s90 = scalar_select %p87, %s88, %s89
      %p93 = pneg %p87
      %p94 = scmp.eq.s32.totalorder %s10, 1
      %p95 = por %p93, %p94
      %p96 = scmp.ne.s32.totalorder %s88, %s91
      %p97 = scmp.eq.s32.totalorder %s10, 0
      %p98 = por %p96, %p97
      %p99 = scmp.ne.s32.totalorder %s88, %s91
      %p100 = scmp.eq.s32.totalorder %s15, 1
      %p101 = por %p99, %p100
      %p102 = scmp.ne.s32.totalorder %s91, %s92
      %p103 = scmp.eq.s32.totalorder %s15, 0
      %p104 = por %p102, %p103
      %p105 = scmp.ne.s32.totalorder %s91, %s92
      %p106 = scmp.eq.s32.totalorder %s16, 1
      %p107 = por %p105, %p106
      %p109 = scmp.ne.s32.totalorder %s92, %s108
      %p110 = scmp.eq.s32.totalorder %s16, 0
      %p111 = por %p109, %p110
      %p112 = scmp.le.s32.totalorder 1, %s10
      %p113 = scmp.lt.s32.totalorder %s10, 3
      %p114 = pnand %p112, %p113
      %p115 = pneg %p114
      // Predicated region
      $region9: #{tpu_custom_call.1} parent=5 // pred_check
        _
      $region10: #{tpu_custom_call.1} parent=5 // pred_check_branch
        %117 = sbr.rel (%p114) target = $region12
      $region11: #{tpu_custom_call.1} parent=5 // pred_region
        %s118 = ssub.s32 %s10, 1
        // Predicated region
        $region13: #{tpu_custom_call.1} parent=11 // pred_check
          %p119 = pneg %p57
        $region14: #{tpu_custom_call.1} parent=11 // pred_check_branch
          %121 = sbr.rel (%p119) target = $region16
        $region15: #{tpu_custom_call.1} parent=11 // pred_region
          _
        $region16: #{tpu_custom_call.1} parent=11 // pred_fallthru
          _
        // Predicated region
        $region17: #{tpu_custom_call.1} parent=11 // pred_check
          %p122 = pneg %p78
        $region18: #{tpu_custom_call.1} parent=11 // pred_check_branch
          %124 = sbr.rel (%p122) target = $region20
        $region19: #{tpu_custom_call.1} parent=11 // pred_region
          %s126 = ssub.s32 512, 512
          %127 = vsyncadd [#allocation3], %s126
          %s128 = sshll.u32 [#allocation2], 4
          %s129 = int_to_ptr.vmem [resolvable:$true] %s128
          %134 = dma.hbm_to_vmem [thread:$0]  %s2, 512, %s129, [#allocation3], 128, 128, 8
        $region20: #{tpu_custom_call.1} parent=11 // pred_fallthru
          _
      $region12: #{tpu_custom_call.1} parent=5 // pred_fallthru
        _
      %p135 = scmp.lt.s32.totalorder %s10, 2
      // Predicated region
      $region21: #{tpu_custom_call.1} parent=5 // pred_check
        %p136 = pneg %p135
      $region22: #{tpu_custom_call.1} parent=5 // pred_check_branch
        %138 = sbr.rel (%p136) target = $region24
      $region23: #{tpu_custom_call.1} parent=5 // pred_region
        // Predicated region
        $region25: #{tpu_custom_call.1} parent=23 // pred_check
          %p139 = pneg %p30
        $region26: #{tpu_custom_call.1} parent=23 // pred_check_branch
          %141 = sbr.rel (%p139) target = $region28
        $region27: #{tpu_custom_call.1} parent=23 // pred_region
          %p142 = scmp.lt.s32.totalorder %s10, 1
          %s143 = scalar_select %p142, %s10, 1
          %s144 = smul.addr %s143, 4
          %s145 = smul.addr %s144, 8
          %s146 = scalar_lea.vmem %s0, %s145
        $region28: #{tpu_custom_call.1} parent=23 // pred_fallthru
          _
      $region24: #{tpu_custom_call.1} parent=5 // pred_fallthru
        _
      %p147 = scmp.le.s32.totalorder 1, %s10
      %p148 = scmp.lt.s32.totalorder %s10, 3
      %p149 = pnand %p147, %p148
      %p150 = pneg %p149
      // Predicated region
      $region29: #{tpu_custom_call.1} parent=5 // pred_check
        _
      $region30: #{tpu_custom_call.1} parent=5 // pred_check_branch
        %152 = sbr.rel (%p149) target = $region32
      $region31: #{tpu_custom_call.1} parent=5 // pred_region
        %s153 = ssub.s32 %s10, 1
        // Predicated region
        $region33: #{tpu_custom_call.1} parent=31 // pred_check
          %p154 = pneg %p78
        $region34: #{tpu_custom_call.1} parent=31 // pred_check_branch
          %156 = sbr.rel (%p154) target = $region36
        $region35: #{tpu_custom_call.1} parent=31 // pred_region
          %157 = dma.done [#allocation3], 512
        $region36: #{tpu_custom_call.1} parent=31 // pred_fallthru
          _
        %p158 = scmp.lt.s32.totalorder %s15, 1
        %s159 = scalar_select %p158, %s15, 1
        %s160 = smul.addr %s159, 4
        %s161 = smul.addr %s160, 8
        %s162 = scalar_lea.vmem %s0, %s161
        %p163 = pneg %p36
        %p164 = pneg %p33
        %p165 = pneg %p57
        %p166 = pneg %p54
        %p167 = pneg %p78
        %p168 = pneg %p75
        %p169 = pneg %p104
        %p170 = pneg %p101
        %p171 = scmp.lt.s32.totalorder %s15, 1
        %s172 = scalar_select %p171, %s15, 1
        %s173 = smul.addr %s172, 4
        %s174 = smul.addr %s173, 8
        %s175 = scalar_lea.vmem %s3, %s174
        %p176 = scmp.lt.s32.totalorder %s15, 1
        %s177 = scalar_select %p176, %s15, 1
        %s178 = smul.addr %s177, 4
        %s179 = smul.addr %s178, 8
        %s180 = scalar_lea.vmem %s0, %s179
        %p181 = scmp.lt.s32.totalorder %s15, 1
        %s182 = scalar_select %p181, %s15, 1
        %s183 = smul.addr %s182, 4
        %s184 = smul.addr %s183, 8
        %s185 = scalar_lea.vmem %s3, %s184
        %v186 = vlaneseq
        %v187 = vshrl.u32 %v186, 7
        %v188 = vadd.s32 %v187, 8
        %v189 = vlaneseq
        %v190 = vand.u32 %v189, 127
        %v191 = vadd.s32 %v187, 1
        %v192 = vadd.s32 %v188, 1
        %vm193 = vcmp.eq.s32.totalorder %v191, %v190
        %vm194 = vcmp.eq.s32.totalorder %v192, %v190
        %v195 = vsel %vm193, 1.0, 0.0
        %v196 = vsel %vm194, 1.0, 0.0
        %v197 = vadd.s32 %v190, 1
        %vm198 = vcmp.eq.s32.totalorder %v187, %v197
        %vm199 = vcmp.eq.s32.totalorder %v188, %v197
        %v200 = vsel %vm198, 1.0, 0.0
        %v201 = vsel %vm199, 1.0, 0.0
        %v202 = vld [vmem:[%s1] sm:$0xff]
        %v203 = vld [vmem:[%s1 + $0x8] sm:$0xff]
        %v204 = vld [vmem:[%s1 + $0x10] sm:$0xff]
        %v205 = vld [vmem:[%s1 + $0x18] sm:$0xff]
        %s206 = scalar_lea.vmem %s1, 32
        %v207 = vld [vmem:[%s206] sm:$0xff]
        %v208 = vld [vmem:[%s206 + $0x8] sm:$0xff]
        %v209 = vld [vmem:[%s206 + $0x10] sm:$0xff]
        %v210 = vld [vmem:[%s206 + $0x18] sm:$0xff]
        %s211 = scalar_lea.vmem %s1, 64
        %v212 = vld [vmem:[%s211] sm:$0xff]
        %v213 = vld [vmem:[%s211 + $0x8] sm:$0xff]
        %v214 = vld [vmem:[%s211 + $0x10] sm:$0xff]
        %v215 = vld [vmem:[%s211 + $0x18] sm:$0xff]
        %v216 = vld [vmem:[#allocation2] sm:$0xff]
        %v217 = vld [vmem:[#allocation2 + $0x8] sm:$0xff]
        %v218 = vld [vmem:[#allocation2 + $0x10] sm:$0xff]
        %v219 = vld [vmem:[#allocation2 + $0x18] sm:$0xff]
        %v220 = vld [vmem:[%s180] sm:$0xff]
        %v221 = vld [vmem:[%s180 + $0x8] sm:$0xff]
        %v222 = vld [vmem:[%s180 + $0x10] sm:$0xff]
        %v223 = vld [vmem:[%s180 + $0x18] sm:$0xff]
        %vm224 = vcmask 130048
        %v226 = vsel %vm224, %v220, 0
        %v229 = vsel %vm224, %v221, 0
        %v232 = vsel %vm224, %v222, 0
        %v235 = vsel %vm224, %v223, 0
        %237 = vmatprep.subr.mxu0 0.0
        %238 = vmatpush1.msra.mxu0 0.0
        %239 = vmatprep.subr.mxu0 0.0
        %240 = vmatpush1.msra.mxu0 0.0
        %241 = vmatprep.subr.mxu0 0.0
        %242 = vmatpush1.msra.mxu0 0.0
        %243 = vmatprep.subr.mxu0 0.0
        %244 = vmatpush1.msra.mxu0 0.0
        %245 = vmatprep.subr.mxu0 0.0
        %246 = vmatpush1.msra.mxu0 0.0
        %247 = vmatprep.subr.mxu0 0.0
        %248 = vmatpush1.msra.mxu0 0.0
        %249 = vmatprep.subr.mxu0 0.0
        %250 = vmatpush1.msra.mxu0 0.0
        %251 = vmatprep.subr.mxu0 0.0
        %252 = vmatpush1.msra.mxu0 0.0
        %253 = vmatprep.subr.mxu0 0.0
        %254 = vmatpush1.msra.mxu0 0.0
        %255 = vmatprep.subr.mxu0 0.0
        %256 = vmatpush1.msra.mxu0 0.0
        %257 = vmatprep.subr.mxu0 0.0
        %258 = vmatpush1.msra.mxu0 0.0
        %259 = vmatprep.subr.mxu0 0.0
        %260 = vmatpush1.msra.mxu0 0.0
        %261 = vmatprep.subr.mxu0 0.0
        %262 = vmatpush1.msra.mxu0 0.0
        %263 = vmatprep.subr.mxu0 0.0
        %264 = vmatpush1.msra.mxu0 0.0
        %265 = vmatprep.subr.mxu0 0.0
        %266 = vmatpush1.msra.mxu0 %v196
        %267 = vmatprep.subr.mxu0 0.0
        %268 = vmatpush1.msra.mxu0 %v195
        %269 = vmatprep.subr.mxu0 0.0
        %270 = vmatpush2.msra.mxu0 0.0
        %271 = vmatprep.subr.mxu0 0.0
        %272 = vmatpush2.msra.mxu0 0.0
        %273 = vmatprep.subr.mxu0 0.0
        %274 = vmatpush2.msra.mxu0 0.0
        %275 = vmatprep.subr.mxu0 0.0
        %276 = vmatpush2.msra.mxu0 0.0
        %277 = vmatprep.subr.mxu0 0.0
        %278 = vmatpush2.msra.mxu0 0.0
        %279 = vmatprep.subr.mxu0 0.0
        %280 = vmatpush2.msra.mxu0 0.0
        %281 = vmatprep.subr.mxu0 0.0
        %282 = vmatpush2.msra.mxu0 0.0
        %283 = vmatprep.subr.mxu0 0.0
        %284 = vmatpush2.msra.mxu0 0.0
        %285 = vmatprep.subr.mxu0 0.0
        %286 = vmatpush2.msra.mxu0 0.0
        %287 = vmatprep.subr.mxu0 0.0
        %288 = vmatpush2.msra.mxu0 0.0
        %289 = vmatprep.subr.mxu0 0.0
        %290 = vmatpush2.msra.mxu0 0.0
        %291 = vmatprep.subr.mxu0 0.0
        %292 = vmatpush2.msra.mxu0 0.0
        %293 = vmatprep.subr.mxu0 0.0
        %294 = vmatpush2.msra.mxu0 0.0
        %295 = vmatprep.subr.mxu0 0.0
        %296 = vmatpush2.msra.mxu0 0.0
        %297 = vmatprep.subr.mxu0 0.0
        %298 = vmatpush2.msra.mxu0 0.0
        %299 = vmatprep.subr.mxu0 0.0
        %300 = vmatpush2.msra.mxu0 0.0
        %301 = vmatprep.mubr.f32.mxu0 0.0
        %302 = vmatmul.mubr.f32.gmra.mxu0 %v226
        %v303 = vpop.f32.mrf.mxu0
        %v304 = vadd.f32 0.0, %v303
        %v305 = vpop.f32.mrf.mxu0
        %306 = vmatprep.mubr.f32.mxu0 0.0
        %307 = vmatmul.mubr.f32.gmra.mxu0 %v229
        %v308 = vpop.f32.mrf.mxu0
        %v309 = vadd.f32 0.0, %v308
        %v310 = vpop.f32.mrf.mxu0
        %311 = vmatprep.mubr.f32.mxu0 0.0
        %312 = vmatmul.mubr.f32.gmra.mxu0 %v232
        %v313 = vpop.f32.mrf.mxu0
        %v314 = vadd.f32 0.0, %v313
        %v315 = vpop.f32.mrf.mxu0
        %316 = vmatprep.mubr.f32.mxu0 0.0
        %317 = vmatmul.mubr.f32.gmra.mxu0 %v235
        %v318 = vpop.f32.mrf.mxu0
        %v319 = vadd.f32 0.0, %v318
        %v320 = vpop.f32.mrf.mxu0
        %321 = vdwg.mxu0
        %322 = vmatprep.subr.mxu0 0.0
        %323 = vmatpush1.msra.mxu0 0.0
        %324 = vmatprep.subr.mxu0 0.0
        %325 = vmatpush1.msra.mxu0 0.0
        %326 = vmatprep.subr.mxu0 0.0
        %327 = vmatpush1.msra.mxu0 0.0
        %328 = vmatprep.subr.mxu0 0.0
        %329 = vmatpush1.msra.mxu0 0.0
        %330 = vmatprep.subr.mxu0 0.0
        %331 = vmatpush1.msra.mxu0 0.0
        %332 = vmatprep.subr.mxu0 0.0
        %333 = vmatpush1.msra.mxu0 0.0
        %334 = vmatprep.subr.mxu0 0.0
        %335 = vmatpush1.msra.mxu0 0.0
        %336 = vmatprep.subr.mxu0 0.0
        %337 = vmatpush1.msra.mxu0 0.0
        %338 = vmatprep.subr.mxu0 0.0
        %339 = vmatpush1.msra.mxu0 0.0
        %340 = vmatprep.subr.mxu0 0.0
        %341 = vmatpush1.msra.mxu0 0.0
        %342 = vmatprep.subr.mxu0 0.0
        %343 = vmatpush1.msra.mxu0 0.0
        %344 = vmatprep.subr.mxu0 0.0
        %345 = vmatpush1.msra.mxu0 0.0
        %346 = vmatprep.subr.mxu0 0.0
        %347 = vmatpush1.msra.mxu0 0.0
        %348 = vmatprep.subr.mxu0 0.0
        %349 = vmatpush1.msra.mxu0 0.0
        %350 = vmatprep.subr.mxu0 0.0
        %351 = vmatpush1.msra.mxu0 %v201
        %352 = vmatprep.subr.mxu0 0.0
        %353 = vmatpush1.msra.mxu0 %v200
        %354 = vmatprep.subr.mxu0 0.0
        %355 = vmatpush2.msra.mxu0 0.0
        %356 = vmatprep.subr.mxu0 0.0
        %357 = vmatpush2.msra.mxu0 0.0
        %358 = vmatprep.subr.mxu0 0.0
        %359 = vmatpush2.msra.mxu0 0.0
        %360 = vmatprep.subr.mxu0 0.0
        %361 = vmatpush2.msra.mxu0 0.0
        %362 = vmatprep.subr.mxu0 0.0
        %363 = vmatpush2.msra.mxu0 0.0
        %364 = vmatprep.subr.mxu0 0.0
        %365 = vmatpush2.msra.mxu0 0.0
        %366 = vmatprep.subr.mxu0 0.0
        %367 = vmatpush2.msra.mxu0 0.0
        %368 = vmatprep.subr.mxu0 0.0
        %369 = vmatpush2.msra.mxu0 0.0
        %370 = vmatprep.subr.mxu0 0.0
        %371 = vmatpush2.msra.mxu0 0.0
        %372 = vmatprep.subr.mxu0 0.0
        %373 = vmatpush2.msra.mxu0 0.0
        %374 = vmatprep.subr.mxu0 0.0
        %375 = vmatpush2.msra.mxu0 0.0
        %376 = vmatprep.subr.mxu0 0.0
        %377 = vmatpush2.msra.mxu0 0.0
        %378 = vmatprep.subr.mxu0 0.0
        %379 = vmatpush2.msra.mxu0 0.0
        %380 = vmatprep.subr.mxu0 0.0
        %381 = vmatpush2.msra.mxu0 0.0
        %382 = vmatprep.subr.mxu0 0.0
        %383 = vmatpush2.msra.mxu0 0.0
        %384 = vmatprep.subr.mxu0 0.0
        %385 = vmatpush2.msra.mxu0 0.0
        %386 = vmatprep.mubr.f32.mxu0 0.0
        %387 = vmatmul.mubr.f32.gmra.mxu0 %v226
        %v388 = vpop.f32.mrf.mxu0
        %v389 = vadd.f32 0.0, %v388
        %v390 = vpop.f32.mrf.mxu0
        %391 = vmatprep.mubr.f32.mxu0 0.0
        %392 = vmatmul.mubr.f32.gmra.mxu0 %v229
        %v393 = vpop.f32.mrf.mxu0
        %v394 = vadd.f32 0.0, %v393
        %v395 = vpop.f32.mrf.mxu0
        %396 = vmatprep.mubr.f32.mxu0 0.0
        %397 = vmatmul.mubr.f32.gmra.mxu0 %v232
        %v398 = vpop.f32.mrf.mxu0
        %v399 = vadd.f32 0.0, %v398
        %v400 = vpop.f32.mrf.mxu0
        %401 = vmatprep.mubr.f32.mxu0 0.0
        %402 = vmatmul.mubr.f32.gmra.mxu0 %v235
        %v403 = vpop.f32.mrf.mxu0
        %v404 = vadd.f32 0.0, %v403
        %v405 = vpop.f32.mrf.mxu0
        %406 = vdwg.mxu0
        %vm407 = vcmask 261120
        %v409 = vsel %vm407, %v207, 0
        %v412 = vsel %vm407, %v208, 0
        %v415 = vsel %vm407, %v209, 0
        %v418 = vsel %vm407, %v210, 0
        %420 = vmatprep.subr.mxu0 0.0
        %421 = vmatpush1.msra.mxu0 0.0
        %422 = vmatprep.subr.mxu0 0.0
        %423 = vmatpush1.msra.mxu0 0.0
        %424 = vmatprep.subr.mxu0 0.0
        %425 = vmatpush1.msra.mxu0 0.0
        %426 = vmatprep.subr.mxu0 0.0
        %427 = vmatpush1.msra.mxu0 0.0
        %428 = vmatprep.subr.mxu0 0.0
        %429 = vmatpush1.msra.mxu0 0.0
        %430 = vmatprep.subr.mxu0 0.0
        %431 = vmatpush1.msra.mxu0 0.0
        %432 = vmatprep.subr.mxu0 0.0
        %433 = vmatpush1.msra.mxu0 0.0
        %434 = vmatprep.subr.mxu0 0.0
        %435 = vmatpush1.msra.mxu0 0.0
        %436 = vmatprep.subr.mxu0 0.0
        %437 = vmatpush1.msra.mxu0 0.0
        %438 = vmatprep.subr.mxu0 0.0
        %439 = vmatpush1.msra.mxu0 0.0
        %440 = vmatprep.subr.mxu0 0.0
        %441 = vmatpush1.msra.mxu0 0.0
        %442 = vmatprep.subr.mxu0 0.0
        %443 = vmatpush1.msra.mxu0 0.0
        %444 = vmatprep.subr.mxu0 0.0
        %445 = vmatpush1.msra.mxu0 %v223
        %446 = vmatprep.subr.mxu0 0.0
        %447 = vmatpush1.msra.mxu0 %v222
        %448 = vmatprep.subr.mxu0 0.0
        %449 = vmatpush1.msra.mxu0 %v221
        %450 = vmatprep.subr.mxu0 0.0
        %451 = vmatpush1.msra.mxu0 %v220
        %452 = vmatprep.subr.mxu0 0.0
        %453 = vmatpush2.msra.mxu0 0.0
        %454 = vmatprep.subr.mxu0 0.0
        %455 = vmatpush2.msra.mxu0 0.0
        %456 = vmatprep.subr.mxu0 0.0
        %457 = vmatpush2.msra.mxu0 0.0
        %458 = vmatprep.subr.mxu0 0.0
        %459 = vmatpush2.msra.mxu0 0.0
        %460 = vmatprep.subr.mxu0 0.0
        %461 = vmatpush2.msra.mxu0 0.0
        %462 = vmatprep.subr.mxu0 0.0
        %463 = vmatpush2.msra.mxu0 0.0
        %464 = vmatprep.subr.mxu0 0.0
        %465 = vmatpush2.msra.mxu0 0.0
        %466 = vmatprep.subr.mxu0 0.0
        %467 = vmatpush2.msra.mxu0 0.0
        %468 = vmatprep.subr.mxu0 0.0
        %469 = vmatpush2.msra.mxu0 0.0
        %470 = vmatprep.subr.mxu0 0.0
        %471 = vmatpush2.msra.mxu0 0.0
        %472 = vmatprep.subr.mxu0 0.0
        %473 = vmatpush2.msra.mxu0 0.0
        %474 = vmatprep.subr.mxu0 0.0
        %475 = vmatpush2.msra.mxu0 0.0
        %476 = vmatprep.subr.mxu0 0.0
        %477 = vmatpush2.msra.mxu0 0.0
        %478 = vmatprep.subr.mxu0 0.0
        %479 = vmatpush2.msra.mxu0 0.0
        %480 = vmatprep.subr.mxu0 0.0
        %481 = vmatpush2.msra.mxu0 0.0
        %482 = vmatprep.subr.mxu0 0.0
        %483 = vmatpush2.msra.mxu0 0.0
        %484 = vmatprep.mubr.f32.mxu0 0.0
        %485 = vmatmul.mubr.f32.gmra.mxu0 %v409
        %v486 = vpop.f32.mrf.mxu0
        %v487 = vadd.f32 0.0, %v486
        %v488 = vpop.f32.mrf.mxu0
        %489 = vmatprep.mubr.f32.mxu0 0.0
        %490 = vmatmul.mubr.f32.gmra.mxu0 %v412
        %v491 = vpop.f32.mrf.mxu0
        %v492 = vadd.f32 0.0, %v491
        %v493 = vpop.f32.mrf.mxu0
        %494 = vmatprep.mubr.f32.mxu0 0.0
        %495 = vmatmul.mubr.f32.gmra.mxu0 %v415
        %v496 = vpop.f32.mrf.mxu0
        %v497 = vadd.f32 0.0, %v496
        %v498 = vpop.f32.mrf.mxu0
        %499 = vmatprep.mubr.f32.mxu0 0.0
        %500 = vmatmul.mubr.f32.gmra.mxu0 %v418
        %v501 = vpop.f32.mrf.mxu0
        %v502 = vadd.f32 0.0, %v501
        %v503 = vpop.f32.mrf.mxu0
        %504 = vdwg.mxu0
        %v506 = vsel %vm407, %v202, 0
        %v509 = vsel %vm407, %v203, 0
        %v512 = vsel %vm407, %v204, 0
        %v515 = vsel %vm407, %v205, 0
        %517 = vmatprep.subr.mxu0 0.0
        %518 = vmatpush1.msra.mxu0 0.0
        %519 = vmatprep.subr.mxu0 0.0
        %520 = vmatpush1.msra.mxu0 0.0
        %521 = vmatprep.subr.mxu0 0.0
        %522 = vmatpush1.msra.mxu0 0.0
        %523 = vmatprep.subr.mxu0 0.0
        %524 = vmatpush1.msra.mxu0 0.0
        %525 = vmatprep.subr.mxu0 0.0
        %526 = vmatpush1.msra.mxu0 0.0
        %527 = vmatprep.subr.mxu0 0.0
        %528 = vmatpush1.msra.mxu0 0.0
        %529 = vmatprep.subr.mxu0 0.0
        %530 = vmatpush1.msra.mxu0 0.0
        %531 = vmatprep.subr.mxu0 0.0
        %532 = vmatpush1.msra.mxu0 0.0
        %533 = vmatprep.subr.mxu0 0.0
        %534 = vmatpush1.msra.mxu0 0.0
        %535 = vmatprep.subr.mxu0 0.0
        %536 = vmatpush1.msra.mxu0 0.0
        %537 = vmatprep.subr.mxu0 0.0
        %538 = vmatpush1.msra.mxu0 0.0
        %539 = vmatprep.subr.mxu0 0.0
        %540 = vmatpush1.msra.mxu0 0.0
        %541 = vmatprep.subr.mxu0 0.0
        %542 = vmatpush1.msra.mxu0 %v319
        %543 = vmatprep.subr.mxu0 0.0
        %544 = vmatpush1.msra.mxu0 %v314
        %545 = vmatprep.subr.mxu0 0.0
        %546 = vmatpush1.msra.mxu0 %v309
        %547 = vmatprep.subr.mxu0 0.0
        %548 = vmatpush1.msra.mxu0 %v304
        %549 = vmatprep.subr.mxu0 0.0
        %550 = vmatpush2.msra.mxu0 0.0
        %551 = vmatprep.subr.mxu0 0.0
        %552 = vmatpush2.msra.mxu0 0.0
        %553 = vmatprep.subr.mxu0 0.0
        %554 = vmatpush2.msra.mxu0 0.0
        %555 = vmatprep.subr.mxu0 0.0
        %556 = vmatpush2.msra.mxu0 0.0
        %557 = vmatprep.subr.mxu0 0.0
        %558 = vmatpush2.msra.mxu0 0.0
        %559 = vmatprep.subr.mxu0 0.0
        %560 = vmatpush2.msra.mxu0 0.0
        %561 = vmatprep.subr.mxu0 0.0
        %562 = vmatpush2.msra.mxu0 0.0
        %563 = vmatprep.subr.mxu0 0.0
        %564 = vmatpush2.msra.mxu0 0.0
        %565 = vmatprep.subr.mxu0 0.0
        %566 = vmatpush2.msra.mxu0 0.0
        %567 = vmatprep.subr.mxu0 0.0
        %568 = vmatpush2.msra.mxu0 0.0
        %569 = vmatprep.subr.mxu0 0.0
        %570 = vmatpush2.msra.mxu0 0.0
        %571 = vmatprep.subr.mxu0 0.0
        %572 = vmatpush2.msra.mxu0 0.0
        %573 = vmatprep.subr.mxu0 0.0
        %574 = vmatpush2.msra.mxu0 0.0
        %575 = vmatprep.subr.mxu0 0.0
        %576 = vmatpush2.msra.mxu0 0.0
        %577 = vmatprep.subr.mxu0 0.0
        %578 = vmatpush2.msra.mxu0 0.0
        %579 = vmatprep.subr.mxu0 0.0
        %580 = vmatpush2.msra.mxu0 0.0
        %581 = vmatprep.mubr.f32.mxu0 0.0
        %582 = vmatmul.mubr.f32.gmra.mxu0 %v506
        %v583 = vpop.f32.mrf.mxu0
        %v584 = vadd.f32 %v487, %v583
        %v585 = vpop.f32.mrf.mxu0
        %586 = vmatprep.mubr.f32.mxu0 0.0
        %587 = vmatmul.mubr.f32.gmra.mxu0 %v509
        %v588 = vpop.f32.mrf.mxu0
        %v589 = vadd.f32 %v492, %v588
        %v590 = vpop.f32.mrf.mxu0
        %591 = vmatprep.mubr.f32.mxu0 0.0
        %592 = vmatmul.mubr.f32.gmra.mxu0 %v512
        %v593 = vpop.f32.mrf.mxu0
        %v594 = vadd.f32 %v497, %v593
        %v595 = vpop.f32.mrf.mxu0
        %596 = vmatprep.mubr.f32.mxu0 0.0
        %597 = vmatmul.mubr.f32.gmra.mxu0 %v515
        %v598 = vpop.f32.mrf.mxu0
        %v599 = vadd.f32 %v502, %v598
        %v600 = vpop.f32.mrf.mxu0
        %601 = vdwg.mxu0
        %v603 = vsel %vm407, %v212, 0
        %v606 = vsel %vm407, %v213, 0
        %v609 = vsel %vm407, %v214, 0
        %v612 = vsel %vm407, %v215, 0
        %614 = vmatprep.subr.mxu0 0.0
        %615 = vmatpush1.msra.mxu0 0.0
        %616 = vmatprep.subr.mxu0 0.0
        %617 = vmatpush1.msra.mxu0 0.0
        %618 = vmatprep.subr.mxu0 0.0
        %619 = vmatpush1.msra.mxu0 0.0
        %620 = vmatprep.subr.mxu0 0.0
        %621 = vmatpush1.msra.mxu0 0.0
        %622 = vmatprep.subr.mxu0 0.0
        %623 = vmatpush1.msra.mxu0 0.0
        %624 = vmatprep.subr.mxu0 0.0
        %625 = vmatpush1.msra.mxu0 0.0
        %626 = vmatprep.subr.mxu0 0.0
        %627 = vmatpush1.msra.mxu0 0.0
        %628 = vmatprep.subr.mxu0 0.0
        %629 = vmatpush1.msra.mxu0 0.0
        %630 = vmatprep.subr.mxu0 0.0
        %631 = vmatpush1.msra.mxu0 0.0
        %632 = vmatprep.subr.mxu0 0.0
        %633 = vmatpush1.msra.mxu0 0.0
        %634 = vmatprep.subr.mxu0 0.0
        %635 = vmatpush1.msra.mxu0 0.0
        %636 = vmatprep.subr.mxu0 0.0
        %637 = vmatpush1.msra.mxu0 0.0
        %638 = vmatprep.subr.mxu0 0.0
        %639 = vmatpush1.msra.mxu0 %v404
        %640 = vmatprep.subr.mxu0 0.0
        %641 = vmatpush1.msra.mxu0 %v399
        %642 = vmatprep.subr.mxu0 0.0
        %643 = vmatpush1.msra.mxu0 %v394
        %644 = vmatprep.subr.mxu0 0.0
        %645 = vmatpush1.msra.mxu0 %v389
        %646 = vmatprep.subr.mxu0 0.0
        %647 = vmatpush2.msra.mxu0 0.0
        %648 = vmatprep.subr.mxu0 0.0
        %649 = vmatpush2.msra.mxu0 0.0
        %650 = vmatprep.subr.mxu0 0.0
        %651 = vmatpush2.msra.mxu0 0.0
        %652 = vmatprep.subr.mxu0 0.0
        %653 = vmatpush2.msra.mxu0 0.0
        %654 = vmatprep.subr.mxu0 0.0
        %655 = vmatpush2.msra.mxu0 0.0
        %656 = vmatprep.subr.mxu0 0.0
        %657 = vmatpush2.msra.mxu0 0.0
        %658 = vmatprep.subr.mxu0 0.0
        %659 = vmatpush2.msra.mxu0 0.0
        %660 = vmatprep.subr.mxu0 0.0
        %661 = vmatpush2.msra.mxu0 0.0
        %662 = vmatprep.subr.mxu0 0.0
        %663 = vmatpush2.msra.mxu0 0.0
        %664 = vmatprep.subr.mxu0 0.0
        %665 = vmatpush2.msra.mxu0 0.0
        %666 = vmatprep.subr.mxu0 0.0
        %667 = vmatpush2.msra.mxu0 0.0
        %668 = vmatprep.subr.mxu0 0.0
        %669 = vmatpush2.msra.mxu0 0.0
        %670 = vmatprep.subr.mxu0 0.0
        %671 = vmatpush2.msra.mxu0 0.0
        %672 = vmatprep.subr.mxu0 0.0
        %673 = vmatpush2.msra.mxu0 0.0
        %674 = vmatprep.subr.mxu0 0.0
        %675 = vmatpush2.msra.mxu0 0.0
        %676 = vmatprep.subr.mxu0 0.0
        %677 = vmatpush2.msra.mxu0 0.0
        %678 = vmatprep.mubr.f32.mxu0 0.0
        %679 = vmatmul.mubr.f32.gmra.mxu0 %v603
        %v680 = vpop.f32.mrf.mxu0
        %v681 = vadd.f32 0.0, %v680
        %v682 = vpop.f32.mrf.mxu0
        %683 = vmatprep.mubr.f32.mxu0 0.0
        %684 = vmatmul.mubr.f32.gmra.mxu0 %v606
        %v685 = vpop.f32.mrf.mxu0
        %v686 = vadd.f32 0.0, %v685
        %v687 = vpop.f32.mrf.mxu0
        %688 = vmatprep.mubr.f32.mxu0 0.0
        %689 = vmatmul.mubr.f32.gmra.mxu0 %v609
        %v690 = vpop.f32.mrf.mxu0
        %v691 = vadd.f32 0.0, %v690
        %v692 = vpop.f32.mrf.mxu0
        %693 = vmatprep.mubr.f32.mxu0 0.0
        %694 = vmatmul.mubr.f32.gmra.mxu0 %v612
        %v695 = vpop.f32.mrf.mxu0
        %v696 = vadd.f32 0.0, %v695
        %v697 = vpop.f32.mrf.mxu0
        %698 = vdwg.mxu0
        %v699 = vadd.f32 %v584, %v681
        %v700 = vadd.f32 %v589, %v686
        %v701 = vadd.f32 %v594, %v691
        %v702 = vadd.f32 %v599, %v696
        %v703 = vmax.f32 %v699, 0.0
        %v704 = vmax.f32 %v700, 0.0
        %v705 = vmax.f32 %v701, 0.0
        %v706 = vmax.f32 %v702, 0.0
        %v708 = vsel %vm407, %v216, 0
        %v711 = vsel %vm407, %v217, 0
        %v714 = vsel %vm407, %v218, 0
        %v717 = vsel %vm407, %v219, 0
        %719 = vmatprep.subr.mxu0 0.0
        %720 = vmatpush1.msra.mxu0 0.0
        %721 = vmatprep.subr.mxu0 0.0
        %722 = vmatpush1.msra.mxu0 0.0
        %723 = vmatprep.subr.mxu0 0.0
        %724 = vmatpush1.msra.mxu0 0.0
        %725 = vmatprep.subr.mxu0 0.0
        %726 = vmatpush1.msra.mxu0 0.0
        %727 = vmatprep.subr.mxu0 0.0
        %728 = vmatpush1.msra.mxu0 0.0
        %729 = vmatprep.subr.mxu0 0.0
        %730 = vmatpush1.msra.mxu0 0.0
        %731 = vmatprep.subr.mxu0 0.0
        %732 = vmatpush1.msra.mxu0 0.0
        %733 = vmatprep.subr.mxu0 0.0
        %734 = vmatpush1.msra.mxu0 0.0
        %735 = vmatprep.subr.mxu0 0.0
        %736 = vmatpush1.msra.mxu0 0.0
        %737 = vmatprep.subr.mxu0 0.0
        %738 = vmatpush1.msra.mxu0 0.0
        %739 = vmatprep.subr.mxu0 0.0
        %740 = vmatpush1.msra.mxu0 0.0
        %741 = vmatprep.subr.mxu0 0.0
        %742 = vmatpush1.msra.mxu0 0.0
        %743 = vmatprep.subr.mxu0 0.0
        %744 = vmatpush1.msra.mxu0 %v706
        %745 = vmatprep.subr.mxu0 0.0
        %746 = vmatpush1.msra.mxu0 %v705
        %747 = vmatprep.subr.mxu0 0.0
        %748 = vmatpush1.msra.mxu0 %v704
        %749 = vmatprep.subr.mxu0 0.0
        %750 = vmatpush1.msra.mxu0 %v703
        %751 = vmatprep.subr.mxu0 0.0
        %752 = vmatpush2.msra.mxu0 0.0
        %753 = vmatprep.subr.mxu0 0.0
        %754 = vmatpush2.msra.mxu0 0.0
        %755 = vmatprep.subr.mxu0 0.0
        %756 = vmatpush2.msra.mxu0 0.0
        %757 = vmatprep.subr.mxu0 0.0
        %758 = vmatpush2.msra.mxu0 0.0
        %759 = vmatprep.subr.mxu0 0.0
        %760 = vmatpush2.msra.mxu0 0.0
        %761 = vmatprep.subr.mxu0 0.0
        %762 = vmatpush2.msra.mxu0 0.0
        %763 = vmatprep.subr.mxu0 0.0
        %764 = vmatpush2.msra.mxu0 0.0
        %765 = vmatprep.subr.mxu0 0.0
        %766 = vmatpush2.msra.mxu0 0.0
        %767 = vmatprep.subr.mxu0 0.0
        %768 = vmatpush2.msra.mxu0 0.0
        %769 = vmatprep.subr.mxu0 0.0
        %770 = vmatpush2.msra.mxu0 0.0
        %771 = vmatprep.subr.mxu0 0.0
        %772 = vmatpush2.msra.mxu0 0.0
        %773 = vmatprep.subr.mxu0 0.0
        %774 = vmatpush2.msra.mxu0 0.0
        %775 = vmatprep.subr.mxu0 0.0
        %776 = vmatpush2.msra.mxu0 0.0
        %777 = vmatprep.subr.mxu0 0.0
        %778 = vmatpush2.msra.mxu0 0.0
        %779 = vmatprep.subr.mxu0 0.0
        %780 = vmatpush2.msra.mxu0 0.0
        %781 = vmatprep.subr.mxu0 0.0
        %782 = vmatpush2.msra.mxu0 0.0
        %783 = vmatprep.mubr.f32.mxu0 0.0
        %784 = vmatmul.mubr.f32.gmra.mxu0 %v708
        %v785 = vpop.f32.mrf.mxu0
        %v786 = vadd.f32 0.0, %v785
        %v787 = vpop.f32.mrf.mxu0
        %788 = vmatprep.mubr.f32.mxu0 0.0
        %789 = vmatmul.mubr.f32.gmra.mxu0 %v711
        %v790 = vpop.f32.mrf.mxu0
        %v791 = vadd.f32 0.0, %v790
        %v792 = vpop.f32.mrf.mxu0
        %793 = vmatprep.mubr.f32.mxu0 0.0
        %794 = vmatmul.mubr.f32.gmra.mxu0 %v714
        %v795 = vpop.f32.mrf.mxu0
        %v796 = vadd.f32 0.0, %v795
        %v797 = vpop.f32.mrf.mxu0
        %798 = vmatprep.mubr.f32.mxu0 0.0
        %799 = vmatmul.mubr.f32.gmra.mxu0 %v717
        %v800 = vpop.f32.mrf.mxu0
        %v801 = vadd.f32 0.0, %v800
        %v802 = vpop.f32.mrf.mxu0
        %803 = vdwg.mxu0
        %v804 = vadd.f32 %v220, %v786
        %v805 = vadd.f32 %v221, %v791
        %v806 = vadd.f32 %v222, %v796
        %v807 = vadd.f32 %v223, %v801
        %808 = vst.msk [vmem:[%s185] sm:$0xff] %vm224, %v804
        %809 = vst.msk [vmem:[%s185 + $0x8] sm:$0xff] %vm224, %v805
        %810 = vst.msk [vmem:[%s185 + $0x10] sm:$0xff] %vm224, %v806
        %811 = vst.msk [vmem:[%s185 + $0x18] sm:$0xff] %vm224, %v807
        %p812 = scmp.lt.s32.totalorder %s15, 1
        %s813 = scalar_select %p812, %s15, 1
        %s814 = smul.addr %s813, 4
        %s815 = smul.addr %s814, 8
        %s816 = scalar_lea.vmem %s3, %s815
        // Predicated region
        $region37: #{tpu_custom_call.1} parent=31 // pred_check
          %p817 = pneg %p101
        $region38: #{tpu_custom_call.1} parent=31 // pred_check_branch
          %819 = sbr.rel (%p817) target = $region40
        $region39: #{tpu_custom_call.1} parent=31 // pred_region
          _
        $region40: #{tpu_custom_call.1} parent=31 // pred_fallthru
          _
      $region32: #{tpu_custom_call.1} parent=5 // pred_fallthru
        _
      %p820 = scmp.le.s32.totalorder 2, %s10
      // Predicated region
      $region41: #{tpu_custom_call.1} parent=5 // pred_check
        %p821 = pneg %p820
      $region42: #{tpu_custom_call.1} parent=5 // pred_check_branch
        %823 = sbr.rel (%p821) target = $region44
      $region43: #{tpu_custom_call.1} parent=5 // pred_region
        %s824 = ssub.s32 %s10, 2
        // Predicated region
        $region45: #{tpu_custom_call.1} parent=43 // pred_check
          %p825 = pneg %p107
        $region46: #{tpu_custom_call.1} parent=43 // pred_check_branch
          %827 = sbr.rel (%p825) target = $region48
        $region47: #{tpu_custom_call.1} parent=43 // pred_region
          %p828 = scmp.lt.s32.totalorder %s16, 1
          %s829 = scalar_select %p828, %s16, 1
          %s830 = smul.addr %s829, 4
          %s831 = smul.addr %s830, 8
          %s832 = scalar_lea.vmem %s3, %s831
        $region48: #{tpu_custom_call.1} parent=43 // pred_fallthru
          _
      $region44: #{tpu_custom_call.1} parent=5 // pred_fallthru
        _
    $region6: #{tpu_custom_call.1} parent=1 // loop_footer
      %s14 = sadd.s32 1, %s10
    $region7: #{tpu_custom_call.1} parent=1 // loop_footer_branch
      %9 = sbr.rel target = $region3
    $region8: #{tpu_custom_call.1} parent=1 // loop_exit
      _
    %833 = vsyncpa [#allocation3], 1
    %s834 = scalar_lea.sflag [#allocation3], 1
    %835 = vsyncpa %s834, 1

</llo_original>
